<compile_context>
chip_gen: v6e
topology: v6e:2x2x1
jax: 0.10.0
libtpu: 0.0.40
codegen_flags: <defaults>
</compile_context>

<pallas_src>
import math
import functools

import jax
import jax.numpy as jnp
from jax.experimental import pallas as pl
from jax.experimental.pallas import tpu as pltpu


# ---------------------------------------------------------------------------
# helpers
# ---------------------------------------------------------------------------
def _round_up(v, m):
    return ((v + m - 1) // m) * m


def _vmem_limit():
    """Derive vmem_limit_bytes from the chip (≈0.65 of physical), else default."""
    try:
        cap = pltpu.get_tpu_info().vmem_capacity_bytes
        return int(cap * 0.65)
    except Exception:
        return None  # fall back to the compiler's default scoped limit


# ---------------------------------------------------------------------------
# Tiled linear kernel:  out = x @ w_t + b      (w_t already in (K, N) layout)
# ---------------------------------------------------------------------------
def linear_kernel(x_ref, w_ref, b_ref, o_ref, acc_ref):
    @pl.when(pl.program_id(2) == 0)
    def _():
        acc_ref[...] = jnp.zeros_like(acc_ref)

    acc_ref[...] += jnp.dot(x_ref[...], w_ref[...],
                            preferred_element_type=jnp.float32)

    @pl.when(pl.program_id(2) == pl.num_programs(2) - 1)
    def _():
        o_ref[...] = (acc_ref[...] + b_ref[...]).astype(o_ref.dtype)


def pallas_linear(x, w_t, b, *, tm_target=512, tn_target=256, tk_target=1024):
    """x: (M, K), w_t: (K, N), b: (N,) -> (M, N).  Pads to tile alignment."""
    M, K = x.shape
    N = w_t.shape[1]
    tm = min(tm_target, _round_up(M, 8))
    tn = min(tn_target, _round_up(N, 128))
    tk = min(tk_target, _round_up(K, 128))
    Mp, Np, Kp = _round_up(M, tm), _round_up(N, tn), _round_up(K, tk)
    xp = x if (Mp == M and Kp == K) else jnp.pad(x, ((0, Mp - M), (0, Kp - K)))
    wp = w_t if (Kp == K and Np == N) else jnp.pad(w_t, ((0, Kp - K), (0, Np - N)))
    bp = b if Np == N else jnp.pad(b, (0, Np - N))

    out = pl.pallas_call(
        linear_kernel,
        out_shape=jax.ShapeDtypeStruct((Mp, Np), x.dtype),
        grid_spec=pltpu.PrefetchScalarGridSpec(
            num_scalar_prefetch=0,
            grid=(Mp // tm, Np // tn, Kp // tk),
            in_specs=[
                pl.BlockSpec((tm, tk), lambda i, j, kk: (i, kk)),
                pl.BlockSpec((tk, tn), lambda i, j, kk: (kk, j)),
                pl.BlockSpec((1, tn), lambda i, j, kk: (0, j)),
            ],
            out_specs=pl.BlockSpec((tm, tn), lambda i, j, kk: (i, j)),
            scratch_shapes=[pltpu.VMEM((tm, tn), jnp.float32)],
        ),
        compiler_params=pltpu.CompilerParams(
            dimension_semantics=("parallel", "parallel", "arbitrary"),
            vmem_limit_bytes=_vmem_limit(),
        ),
    )(xp, wp, bp.reshape(1, Np))
    return out if (Mp == M and Np == N) else out[:M, :N]


# ---------------------------------------------------------------------------
# Out-projection kernel with fused layout swap:
#   x: (bsz, tgt, K)  ->  out: (tgt, bsz, N)      (no XLA transpose pass)
# ---------------------------------------------------------------------------
def outproj_kernel(x_ref, w_ref, b_ref, o_ref, acc_ref):
    nb, tm, tk = x_ref.shape

    @pl.when(pl.program_id(2) == 0)
    def _():
        acc_ref[...] = jnp.zeros_like(acc_ref)

    x2 = x_ref[...].reshape(nb * tm, tk)          # leading-dim merge: free
    acc_ref[...] += jnp.dot(x2, w_ref[...],
                            preferred_element_type=jnp.float32)

    @pl.when(pl.program_id(2) == pl.num_programs(2) - 1)
    def _():
        res = (acc_ref[...] + b_ref[...]).astype(o_ref.dtype)   # (nb*tm, tn)
        for bb in range(nb):                       # static unroll over batch
            o_ref[:, bb, :] = res[bb * tm:(bb + 1) * tm, :]


def pallas_out_proj(x, w_t, b, *, tm_target=512, tn_target=256, tk_target=1024):
    bsz, tgt, K = x.shape
    N = w_t.shape[1]
    tm = min(tm_target, _round_up(tgt, 8))
    tn = min(tn_target, _round_up(N, 128))
    tk = min(tk_target, _round_up(K, 128))
    Mp, Np, Kp = _round_up(tgt, tm), _round_up(N, tn), _round_up(K, tk)
    xp = x if (Mp == tgt and Kp == K) else jnp.pad(
        x, ((0, 0), (0, Mp - tgt), (0, Kp - K)))
    wp = w_t if (Kp == K and Np == N) else jnp.pad(w_t, ((0, Kp - K), (0, Np - N)))
    bp = b if Np == N else jnp.pad(b, (0, Np - N))

    out = pl.pallas_call(
        outproj_kernel,
        out_shape=jax.ShapeDtypeStruct((Mp, bsz, Np), x.dtype),
        grid_spec=pltpu.PrefetchScalarGridSpec(
            num_scalar_prefetch=0,
            grid=(Mp // tm, Np // tn, Kp // tk),
            in_specs=[
                pl.BlockSpec((bsz, tm, tk), lambda i, j, kk: (0, i, kk)),
                pl.BlockSpec((tk, tn), lambda i, j, kk: (kk, j)),
                pl.BlockSpec((1, tn), lambda i, j, kk: (0, j)),
            ],
            out_specs=pl.BlockSpec((tm, bsz, tn), lambda i, j, kk: (i, 0, j)),
            scratch_shapes=[pltpu.VMEM((bsz * tm, tn), jnp.float32)],
        ),
        compiler_params=pltpu.CompilerParams(
            dimension_semantics=("parallel", "parallel", "arbitrary"),
            vmem_limit_bytes=_vmem_limit(),
        ),
    )(xp, wp, bp.reshape(1, Np))
    return out if (Mp == tgt and Np == N) else out[:tgt, :, :N]


# ---------------------------------------------------------------------------
# Attention kernel.
#   q block: (tgt, J, hd), k/v blocks: (src, J, hd) with J = bpb*hpb
#   (bpb batches-per-block, hpb heads-per-block; normally bpb=1, hpb=num_heads)
#   output block: (bpb, tgt, hpb*hd)   -> lane-dense store (heads merged in VMEM)
# ---------------------------------------------------------------------------
def attn_kernel(q_ref, k_ref, v_ref, am_ref, kpm_ref, o_ref, *, scale, bpb, hpb):
    tgt, J, hd = q_ref.shape
    src = k_ref.shape[0]

    # swap to (J, seq, hd) in VMEM (no HBM relayout), scale folded into q,
    # bf16 MXU operands with f32 accumulation.
    q = (jnp.swapaxes(q_ref[...], 0, 1) * scale).astype(jnp.bfloat16)   # (J, tgt, hd)
    k = jnp.swapaxes(k_ref[...], 0, 1).astype(jnp.bfloat16)             # (J, src, hd)
    v = jnp.swapaxes(v_ref[...], 0, 1).astype(jnp.bfloat16)             # (J, src, hd)

    s = jnp.einsum("jqd,jkd->jqk", q, k,
                   preferred_element_type=jnp.float32)                  # (J, tgt, src)

    # additive mask bias (finite -1e30; avoids inf-inf NaN). NOTE: for a fully
    # masked row torch yields NaN, this yields a uniform distribution instead.
    bias = am_ref[...][None, None, :, :] + kpm_ref[...][:, :, None, :]  # (bpb,1,tgt,src)
    s = s.reshape(bpb, hpb, tgt, src) + bias

    # softmax internals kept in f32 (v5e has no bf16 VPU/EUP)
    s = s - jnp.max(s, axis=-1, keepdims=True)
    p = jnp.exp(s)
    p = p * pl.reciprocal(jnp.sum(p, axis=-1, keepdims=True), approx=True)
    p = p.reshape(J, tgt, src).astype(jnp.bfloat16)

    o = jnp.einsum("jqk,jkd->jqd", p, v,
                   preferred_element_type=jnp.float32)                  # (J, tgt, hd)

    # merge heads -> lane-dense (bpb, tgt, hpb*hd) block, single wide store
    o = jnp.swapaxes(o.reshape(bpb, hpb, tgt, hd), 1, 2)                # (bpb,tgt,hpb,hd)
    o_ref[...] = o.reshape(bpb, tgt, hpb * hd).astype(o_ref.dtype)


def _attn_blocking(num_heads, head_dim, tgt, src, bsz):
    """Pick (batches-per-block, heads-per-block) so the axis-1 block of the
    (seq, bsz*H, hd) arrays is sublane-aligned (multiple of 8) or the full
    axis, and the per-step f32 score tensor stays within a VMEM budget."""
    if bsz > 1 and num_heads % 8 != 0:
        return bsz, num_heads              # fallback: whole bsz*H axis in one block
    hpb = num_heads
    if num_heads % 8 == 0:
        budget = 8 * 1024 * 1024           # bytes of f32 scores per grid step
        while (hpb % 2 == 0 and (hpb // 2) % 8 == 0
               and ((hpb // 2) * head_dim) % 128 == 0
               and hpb * tgt * src * 4 > budget):
            hpb //= 2
    return 1, hpb


def pallas_attention(q, k, v, attn_bias, kpm_bias, num_heads, head_dim):
    # q: (tgt, bsz*H, hd), k/v: (src, bsz*H, hd)  (natural in-proj layout)
    # attn_bias: (tgt, src) f32, kpm_bias: (bsz, 1, src) f32
    tgt, BH, hd = q.shape
    src = k.shape[0]
    bsz = BH // num_heads
    embed = num_heads * hd

    bpb, hpb = _attn_blocking(num_heads, head_dim, tgt, src, bsz)
    n_hg = num_heads // hpb
    J = bpb * hpb
    grid = (bsz // bpb, n_hg)

    kernel = functools.partial(attn_kernel, scale=1.0 / math.sqrt(head_dim),
                               bpb=bpb, hpb=hpb)
    return pl.pallas_call(
        kernel,
        out_shape=jax.ShapeDtypeStruct((bsz, tgt, embed), q.dtype),
        grid_spec=pltpu.PrefetchScalarGridSpec(
            num_scalar_prefetch=0,
            grid=grid,
            in_specs=[
                pl.BlockSpec((tgt, J, hd), lambda b, g: (0, b * n_hg + g, 0)),
                pl.BlockSpec((src, J, hd), lambda b, g: (0, b * n_hg + g, 0)),
                pl.BlockSpec((src, J, hd), lambda b, g: (0, b * n_hg + g, 0)),
                pl.BlockSpec((tgt, src), lambda b, g: (0, 0)),      # shared attn mask
                pl.BlockSpec((bpb, 1, src), lambda b, g: (b, 0, 0)),  # per-batch padding
            ],
            out_specs=pl.BlockSpec((bpb, tgt, hpb * hd), lambda b, g: (b, 0, g)),
        ),
        compiler_params=pltpu.CompilerParams(
            dimension_semantics=("parallel", "parallel"),
            vmem_limit_bytes=_vmem_limit(),
        ),
    )(q, k, v, attn_bias, kpm_bias)


# ---------------------------------------------------------------------------
# Full forward (mirrors multi_head_attention_forward, dropout_p = 0.0)
# ---------------------------------------------------------------------------
def multihead_attention_forward(query, key, value, key_padding_mask, attn_mask,
                                in_proj_weight, in_proj_bias,
                                out_proj_weight, out_proj_bias, num_heads):
    tgt_len, bsz, embed_dim = query.shape
    src_len = key.shape[0]
    head_dim = embed_dim // num_heads

    # in-projection: packed weight split, pre-transposed once to (K, N)
    w_q, w_k, w_v = jnp.split(in_proj_weight, 3, axis=0)
    b_q, b_k, b_v = jnp.split(in_proj_bias, 3, axis=0)
    q = pallas_linear(query.reshape(tgt_len * bsz, embed_dim), w_q.T, b_q)
    k = pallas_linear(key.reshape(src_len * bsz, embed_dim), w_k.T, b_k)
    v = pallas_linear(value.reshape(src_len * bsz, embed_dim), w_v.T, b_v)

    # free reshapes only — NO HBM transpose: (seq*bsz, E) -> (seq, bsz*H, hd)
    q = q.reshape(tgt_len, bsz * num_heads, head_dim)
    k = k.reshape(src_len, bsz * num_heads, head_dim)
    v = v.reshape(src_len, bsz * num_heads, head_dim)

    # additive mask biases (finite large-negative; avoids inf-inf NaN)
    neg = jnp.float32(-1e30)
    attn_bias = jnp.where(attn_mask, neg, jnp.float32(0.0))            # (tgt, src)
    kpm_bias = jnp.where(key_padding_mask, neg, jnp.float32(0.0))[:, None, :]  # (bsz,1,src)

    attn_out = pallas_attention(q, k, v, attn_bias, kpm_bias,
                                num_heads, head_dim)                    # (bsz, tgt, E)

    # out-projection fuses the (bsz,tgt) -> (tgt,bsz) layout swap into its store
    out = pallas_out_proj(attn_out, out_proj_weight.T, out_proj_bias)   # (tgt, bsz, E)
    return out


# ---------------------------------------------------------------------------
# pure-JAX reference (mirrors torch semantics, -inf masking) for verification
# ---------------------------------------------------------------------------
def reference_forward(query, key, value, key_padding_mask, attn_mask,
                      in_proj_weight, in_proj_bias,
                      out_proj_weight, out_proj_bias, num_heads):
    tgt_len, bsz, embed_dim = query.shape
    src_len = key.shape[0]
    head_dim = embed_dim // num_heads
    w_q, w_k, w_v = jnp.split(in_proj_weight, 3, axis=0)
    b_q, b_k, b_v = jnp.split(in_proj_bias, 3, axis=0)
    q = query @ w_q.T + b_q
    k = key @ w_k.T + b_k
    v = value @ w_v.T + b_v
    q = q.reshape(tgt_len, bsz * num_heads, head_dim).transpose(1, 0, 2)
    k = k.reshape(src_len, bsz * num_heads, head_dim).transpose(1, 0, 2)
    v = v.reshape(src_len, bsz * num_heads, head_dim).transpose(1, 0, 2)
    kpm = jnp.broadcast_to(
        key_padding_mask[:, None, None, :], (bsz, num_heads, 1, src_len)
    ).reshape(bsz * num_heads, 1, src_len)
    mask = jnp.logical_or(attn_mask[None, :, :], kpm)
    scores = jnp.einsum("bqd,bkd->bqk", q, k) / math.sqrt(head_dim)
    scores = jnp.where(mask, -jnp.inf, scores)
    p = jax.nn.softmax(scores, axis=-1)
    o = jnp.einsum("bqk,bkd->bqd", p, v)
    o = o.transpose(1, 0, 2).reshape(tgt_len * bsz, embed_dim)
    o = o @ out_proj_weight.T + out_proj_bias
    return o.reshape(tgt_len, bsz, embed_dim)


if __name__ == "__main__":
    # Small config consistent with the module: embed_dim=64, num_heads=8,
    # seq=8, batch=2, dropout=0.0 (inference semantics -> dropout is a no-op).
    seq, bsz, embed_dim, num_heads = 8, 2, 64, 8

    key0 = jax.random.PRNGKey(0)
    keys = jax.random.split(key0, 8)

    query = jax.random.normal(keys[0], (seq, bsz, embed_dim), jnp.float32)
    key_t = jax.random.normal(keys[1], (seq, bsz, embed_dim), jnp.float32)
    value = jax.random.normal(keys[2], (seq, bsz, embed_dim), jnp.float32)

    # deterministic parameter init (xavier_uniform for in_proj_weight, zeros biases)
    limit_in = math.sqrt(6.0 / (3 * embed_dim + embed_dim))
    in_proj_weight = jax.random.uniform(
        keys[3], (3 * embed_dim, embed_dim), jnp.float32, -limit_in, limit_in)
    in_proj_bias = jnp.zeros((3 * embed_dim,), jnp.float32)
    limit_out = math.sqrt(6.0 / (embed_dim + embed_dim))
    out_proj_weight = jax.random.uniform(
        keys[4], (embed_dim, embed_dim), jnp.float32, -limit_out, limit_out)
    out_proj_bias = jnp.zeros((embed_dim,), jnp.float32)

    # boolean masks (True == masked out); no row is fully masked.
    attn_mask = jnp.triu(jnp.ones((seq, seq), jnp.bool_), k=2)       # (tgt, src)
    key_padding_mask = jnp.zeros((bsz, seq), jnp.bool_).at[:, -1].set(True)

    out = multihead_attention_forward(
        query, key_t, value, key_padding_mask, attn_mask,
        in_proj_weight, in_proj_bias, out_proj_weight, out_proj_bias, num_heads)
    out = jax.block_until_ready(out)

    ref = reference_forward(
        query, key_t, value, key_padding_mask, attn_mask,
        in_proj_weight, in_proj_bias, out_proj_weight, out_proj_bias, num_heads)

    assert out.shape == (seq, bsz, embed_dim)
    # bf16 MXU operands in attention -> loosened tolerance vs the f32 reference
    max_err = float(jnp.max(jnp.abs(out - ref)))
    assert jnp.allclose(out, ref, rtol=5e-2, atol=5e-2), max_err
    print("KERNEL_OK")
</pallas_src>

<mosaic_0001>
module attributes {stable_mosaic.version = 11 : i64} {
  func.func @linear_kernel(%arg0: i32, %arg1: i32, %arg2: i32, %arg3: memref<16x128xf32, #tpu.memory_space<vmem>>, %arg4: memref<128x128xf32, #tpu.memory_space<vmem>>, %arg5: memref<1x128xf32, #tpu.memory_space<vmem>>, %arg6: memref<16x128xf32, #tpu.memory_space<vmem>>, %arg7: memref<16x128xf32, #tpu.memory_space<vmem>>) attributes {dimension_semantics = [#tpu.dimension_semantics<parallel>, #tpu.dimension_semantics<parallel>, #tpu.dimension_semantics<arbitrary>], iteration_bounds = array<i64: 1, 1, 1>, scalar_prefetch = 0 : i64, scratch_operands = 1 : i64, tpu.core_type = #tpu.core_type<tc>, window_params = [{transform_indices = @transform_0, window_bounds = array<i64: 16, 128>}, {transform_indices = @transform_1, window_bounds = array<i64: 128, 128>}, {transform_indices = @transform_2, window_bounds = array<i64: 1, 128>}, {transform_indices = @transform_3, window_bounds = array<i64: 16, 128>}]} {
    %c0_i32 = arith.constant 0 : i32
    %0 = arith.cmpi eq, %arg2, %c0_i32 : i32
    %1 = arith.extui %0 : i1 to i32
    %c0_i32_0 = arith.constant 0 : i32
    %2 = arith.cmpi ne, %1, %c0_i32_0 : i32
    scf.if %2 {
      %cst_10 = arith.constant 0.000000e+00 : f32
      %12 = vector.broadcast %cst_10 : f32 to vector<16x128xf32>
      %c0_11 = arith.constant 0 : index
      %c0_12 = arith.constant 0 : index
      %13 = vector.load %arg7[%c0_11, %c0_12] : memref<16x128xf32, #tpu.memory_space<vmem>>, vector<16x128xf32>
      tpu.vector_store %arg7[%c0_11, %c0_12], %12 {strides = array<i32>} : memref<16x128xf32, #tpu.memory_space<vmem>>, vector<16x128xf32>,
    } else {
    }
    %c0 = arith.constant 0 : index
    %c0_1 = arith.constant 0 : index
    %3 = vector.load %arg7[%c0, %c0_1] : memref<16x128xf32, #tpu.memory_space<vmem>>, vector<16x128xf32>
    %c0_2 = arith.constant 0 : index
    %c0_3 = arith.constant 0 : index
    %4 = vector.load %arg3[%c0_2, %c0_3] : memref<16x128xf32, #tpu.memory_space<vmem>>, vector<16x128xf32>
    %c0_4 = arith.constant 0 : index
    %c0_5 = arith.constant 0 : index
    %5 = vector.load %arg4[%c0_4, %c0_5] : memref<128x128xf32, #tpu.memory_space<vmem>>, vector<128x128xf32>
    %cst = arith.constant dense<0.000000e+00> : vector<16x128xf32>
    %6 = tpu.matmul %4, %5, %cst {dimension_numbers = #tpu.dot_dimension_numbers<[1], [0], [0], [1], [0, 0, 1, 1], [], []>} : vector<16x128xf32>, vector<128x128xf32>, vector<16x128xf32> -> vector<16x128xf32>
    %7 = arith.addf %3, %6 : vector<16x128xf32>
    %c0_6 = arith.constant 0 : index
    %c0_7 = arith.constant 0 : index
    %8 = vector.load %arg7[%c0_6, %c0_7] : memref<16x128xf32, #tpu.memory_space<vmem>>, vector<16x128xf32>
    tpu.vector_store %arg7[%c0_6, %c0_7], %7 {strides = array<i32>} : memref<16x128xf32, #tpu.memory_space<vmem>>, vector<16x128xf32>,
    %c0_i32_8 = arith.constant 0 : i32
    %9 = arith.cmpi eq, %arg2, %c0_i32_8 : i32
    %10 = arith.extui %9 : i1 to i32
    %c0_i32_9 = arith.constant 0 : i32
    %11 = arith.cmpi ne, %10, %c0_i32_9 : i32
    scf.if %11 {
      %c0_10 = arith.constant 0 : index
      %c0_11 = arith.constant 0 : index
      %12 = vector.load %arg7[%c0_10, %c0_11] : memref<16x128xf32, #tpu.memory_space<vmem>>, vector<16x128xf32>
      %c0_12 = arith.constant 0 : index
      %c0_13 = arith.constant 0 : index
      %13 = vector.load %arg5[%c0_12, %c0_13] : memref<1x128xf32, #tpu.memory_space<vmem>>, vector<1x128xf32>
      %14 = vector.broadcast %13 : vector<1x128xf32> to vector<16x128xf32>
      %15 = arith.addf %12, %14 : vector<16x128xf32>
      %c0_14 = arith.constant 0 : index
      %c0_15 = arith.constant 0 : index
      %16 = vector.load %arg6[%c0_14, %c0_15] : memref<16x128xf32, #tpu.memory_space<vmem>>, vector<16x128xf32>
      tpu.vector_store %arg6[%c0_14, %c0_15], %15 {strides = array<i32>} : memref<16x128xf32, #tpu.memory_space<vmem>>, vector<16x128xf32>,
    } else {
    }
    return
  }
  func.func @transform_0(%arg0: i32, %arg1: i32, %arg2: i32) -> (i32, i32) {
    %c0_i32 = arith.constant 0 : i32
    return %arg0, %arg2 : i32, i32
  }
  func.func @transform_1(%arg0: i32, %arg1: i32, %arg2: i32) -> (i32, i32) {
    %c0_i32 = arith.constant 0 : i32
    return %arg2, %arg1 : i32, i32
  }
  func.func @transform_2(%arg0: i32, %arg1: i32, %arg2: i32) -> (i32, i32) {
    %c0_i32 = arith.constant 0 : i32
    %c0_i32_0 = arith.constant 0 : i32
    return %c0_i32, %arg1 : i32, i32
  }
  func.func @transform_3(%arg0: i32, %arg1: i32, %arg2: i32) -> (i32, i32) {
    %c0_i32 = arith.constant 0 : i32
    return %arg0, %arg1 : i32, i32
  }
}

</mosaic_0001>

<llo_original>
// kernel: tpu_custom_call.1
$region0: #{tpu_custom_call.1}
  #allocation0 [shape = 'u32[]', space=smem, size = 0x4, offset = 0x4, fixed_abs, tag = 'smem constant byte address 0x4 - core index']
  #allocation1 [shape = 'u32[144,128]{1,0:T(1,128)}', space=vmem, size = 0x12000, scoped, tag = 'internal scratch']
  #allocation2 [shape = 'f32[16,128]{1,0:T(8,128)}', space=vmem, size = 0x2000, scoped, tag = 'scratch operand']
  %s0 = inlined_call_operand.hbm [shape: f32[16,128], index: 0, kind: input, shape index: {}]
  %s1 = inlined_call_operand.hbm [shape: f32[128,128], index: 1, kind: input, shape index: {}]
  %s2 = inlined_call_operand.vmem [shape: f32[1,128], index: 2, kind: input, shape index: {}]
  %s3 = inlined_call_operand.hbm [shape: f32[16,128], index: 3, kind: output, shape index: {}]
  %s4 = sld [smem:[#allocation0]]
  $region38: #{tpu_custom_call.1} parent=0
    _
  %s6 = ssub.s32 1, %s4
  %s7 = scalar_select 0, %s6, %s4
  $region1: #{tpu_custom_call.1} parent=0
    #allocation3 [shape = 'u8[8192]{0}', space=vmem, size = 0x2000, scoped, tag = 'input window, operand 0, single buffered']
    #allocation4 [shape = 's32[1]{0}', space=sflag, size = 0x4, scoped, tag = 'scoped memory for tpu_custom_call.1']
    #allocation5 [shape = 's32[1]{0}', space=sflag, size = 0x4, scoped, tag = 'scoped memory for tpu_custom_call.1']
    #allocation6 [shape = 'u8[65536]{0}', space=vmem, size = 0x10000, scoped, tag = 'input window, operand 1, single buffered']
    #allocation7 [shape = 's32[1]{0}', space=sflag, size = 0x4, scoped, tag = 'scoped memory for tpu_custom_call.1']
    #allocation8 [shape = 'u8[8192]{0}', space=vmem, size = 0x2000, scoped, tag = 'output window, operand 0, single buffered']
    %8 = vsyncpa [#allocation4], 0
    %9 = vsyncpa [#allocation7], 0
    %10 = vsyncpa [#allocation5], 0
    // Predicated region
    $region2: #{tpu_custom_call.1} parent=1 // pred_check
      _
    $region3: #{tpu_custom_call.1} parent=1 // pred_check_branch
      %12 = sbr.rel (0) target = $region5
    $region4: #{tpu_custom_call.1} parent=1 // pred_region
      %s14 = ssub.s32 256, 256
      %15 = vsyncadd [#allocation4], %s14
      %s16 = sshll.u32 [#allocation3], 4
      %s17 = int_to_ptr.vmem [resolvable:$true] %s16
      %22 = dma.hbm_to_vmem [thread:$0]  %s0, 256, %s17, [#allocation4], 128, 128, 8
    $region5: #{tpu_custom_call.1} parent=1 // pred_fallthru
      _
    // Predicated region
    $region6: #{tpu_custom_call.1} parent=1 // pred_check
      _
    $region7: #{tpu_custom_call.1} parent=1 // pred_check_branch
      %24 = sbr.rel (0) target = $region9
    $region8: #{tpu_custom_call.1} parent=1 // pred_region
      %s26 = ssub.s32 2048, 2048
      %27 = vsyncadd [#allocation7], %s26
      %s28 = sshll.u32 [#allocation6], 4
      %s29 = int_to_ptr.vmem [resolvable:$true] %s28
      %34 = dma.hbm_to_vmem [thread:$0]  %s1, 2048, %s29, [#allocation7], 128, 128, 8
    $region9: #{tpu_custom_call.1} parent=1 // pred_fallthru
      _
    // Predicated region
    $region10: #{tpu_custom_call.1} parent=1 // pred_check
      _
    $region11: #{tpu_custom_call.1} parent=1 // pred_check_branch
      %36 = sbr.rel (0) target = $region13
    $region12: #{tpu_custom_call.1} parent=1 // pred_region
      _
    $region13: #{tpu_custom_call.1} parent=1 // pred_fallthru
      _
    // Predicated region
    $region14: #{tpu_custom_call.1} parent=1 // pred_check
      _
    $region15: #{tpu_custom_call.1} parent=1 // pred_check_branch
      %38 = sbr.rel (0) target = $region17
    $region16: #{tpu_custom_call.1} parent=1 // pred_region
      %39 = dma.done [#allocation4], 256
    $region17: #{tpu_custom_call.1} parent=1 // pred_fallthru
      _
    // Predicated region
    $region18: #{tpu_custom_call.1} parent=1 // pred_check
      _
    $region19: #{tpu_custom_call.1} parent=1 // pred_check_branch
      %41 = sbr.rel (0) target = $region21
    $region20: #{tpu_custom_call.1} parent=1 // pred_region
      %42 = dma.done [#allocation7], 2048
    $region21: #{tpu_custom_call.1} parent=1 // pred_fallthru
      _
    %p43 = scmp.eq.s32.totalorder 0, 0
    // Predicated region
    $region22: #{tpu_custom_call.1} parent=1 // pred_check
      %p44 = pneg %p43
    $region23: #{tpu_custom_call.1} parent=1 // pred_check_branch
      %46 = sbr.rel (%p44) target = $region25
    $region24: #{tpu_custom_call.1} parent=1 // pred_region
      %47 = vst [vmem:[#allocation2] sm:$0xff] 0.0
      %48 = vst [vmem:[#allocation2 + $0x8] sm:$0xff] 0.0
    $region25: #{tpu_custom_call.1} parent=1 // pred_fallthru
      _
    %v49 = vld [vmem:[#allocation2] sm:$0xff]
    %v50 = vld [vmem:[#allocation2 + $0x8] sm:$0xff]
    %v51 = vld [vmem:[#allocation3] sm:$0xff]
    %v52 = vld [vmem:[#allocation3 + $0x8] sm:$0xff]
    %v53 = vld [vmem:[#allocation6] sm:$0xff]
    %v54 = vld [vmem:[#allocation6 + $0x8] sm:$0xff]
    %v55 = vld [vmem:[#allocation6 + $0x10] sm:$0xff]
    %v56 = vld [vmem:[#allocation6 + $0x18] sm:$0xff]
    %v57 = vld [vmem:[#allocation6 + $0x20] sm:$0xff]
    %v58 = vld [vmem:[#allocation6 + $0x28] sm:$0xff]
    %v59 = vld [vmem:[#allocation6 + $0x30] sm:$0xff]
    %v60 = vld [vmem:[#allocation6 + $0x38] sm:$0xff]
    %v61 = vld [vmem:[#allocation6 + $0x40] sm:$0xff]
    %v62 = vld [vmem:[#allocation6 + $0x48] sm:$0xff]
    %v63 = vld [vmem:[#allocation6 + $0x50] sm:$0xff]
    %v64 = vld [vmem:[#allocation6 + $0x58] sm:$0xff]
    %v65 = vld [vmem:[#allocation6 + $0x60] sm:$0xff]
    %v66 = vld [vmem:[#allocation6 + $0x68] sm:$0xff]
    %v67 = vld [vmem:[#allocation6 + $0x70] sm:$0xff]
    %v68 = vld [vmem:[#allocation6 + $0x78] sm:$0xff]
    %69 = vmatprep.subr.mxu0 0.0
    %70 = vmatpush1.msra.mxu0 %v68
    %71 = vmatprep.subr.mxu0 0.0
    %72 = vmatpush1.msra.mxu0 %v67
    %73 = vmatprep.subr.mxu0 0.0
    %74 = vmatpush1.msra.mxu0 %v66
    %75 = vmatprep.subr.mxu0 0.0
    %76 = vmatpush1.msra.mxu0 %v65
    %77 = vmatprep.subr.mxu0 0.0
    %78 = vmatpush1.msra.mxu0 %v64
    %79 = vmatprep.subr.mxu0 0.0
    %80 = vmatpush1.msra.mxu0 %v63
    %81 = vmatprep.subr.mxu0 0.0
    %82 = vmatpush1.msra.mxu0 %v62
    %83 = vmatprep.subr.mxu0 0.0
    %84 = vmatpush1.msra.mxu0 %v61
    %85 = vmatprep.subr.mxu0 0.0
    %86 = vmatpush1.msra.mxu0 %v60
    %87 = vmatprep.subr.mxu0 0.0
    %88 = vmatpush1.msra.mxu0 %v59
    %89 = vmatprep.subr.mxu0 0.0
    %90 = vmatpush1.msra.mxu0 %v58
    %91 = vmatprep.subr.mxu0 0.0
    %92 = vmatpush1.msra.mxu0 %v57
    %93 = vmatprep.subr.mxu0 0.0
    %94 = vmatpush1.msra.mxu0 %v56
    %95 = vmatprep.subr.mxu0 0.0
    %96 = vmatpush1.msra.mxu0 %v55
    %97 = vmatprep.subr.mxu0 0.0
    %98 = vmatpush1.msra.mxu0 %v54
    %99 = vmatprep.subr.mxu0 0.0
    %100 = vmatpush1.msra.mxu0 %v53
    %101 = vmatprep.subr.mxu0 0.0
    %102 = vmatpush2.msra.mxu0 0.0
    %103 = vmatprep.subr.mxu0 0.0
    %104 = vmatpush2.msra.mxu0 0.0
    %105 = vmatprep.subr.mxu0 0.0
    %106 = vmatpush2.msra.mxu0 0.0
    %107 = vmatprep.subr.mxu0 0.0
    %108 = vmatpush2.msra.mxu0 0.0
    %109 = vmatprep.subr.mxu0 0.0
    %110 = vmatpush2.msra.mxu0 0.0
    %111 = vmatprep.subr.mxu0 0.0
    %112 = vmatpush2.msra.mxu0 0.0
    %113 = vmatprep.subr.mxu0 0.0
    %114 = vmatpush2.msra.mxu0 0.0
    %115 = vmatprep.subr.mxu0 0.0
    %116 = vmatpush2.msra.mxu0 0.0
    %117 = vmatprep.subr.mxu0 0.0
    %118 = vmatpush2.msra.mxu0 0.0
    %119 = vmatprep.subr.mxu0 0.0
    %120 = vmatpush2.msra.mxu0 0.0
    %121 = vmatprep.subr.mxu0 0.0
    %122 = vmatpush2.msra.mxu0 0.0
    %123 = vmatprep.subr.mxu0 0.0
    %124 = vmatpush2.msra.mxu0 0.0
    %125 = vmatprep.subr.mxu0 0.0
    %126 = vmatpush2.msra.mxu0 0.0
    %127 = vmatprep.subr.mxu0 0.0
    %128 = vmatpush2.msra.mxu0 0.0
    %129 = vmatprep.subr.mxu0 0.0
    %130 = vmatpush2.msra.mxu0 0.0
    %131 = vmatprep.subr.mxu0 0.0
    %132 = vmatpush2.msra.mxu0 0.0
    %133 = vmatprep.mubr.f32.mxu0 0.0
    %134 = vmatmul.mubr.f32.gmra.mxu0 %v51
    %v135 = vpop.f32.mrf.mxu0
    %v136 = vadd.f32 0.0, %v135
    %v137 = vpop.f32.mrf.mxu0
    %138 = vmatprep.mubr.f32.mxu0 0.0
    %139 = vmatmul.mubr.f32.gmra.mxu0 %v52
    %v140 = vpop.f32.mrf.mxu0
    %v141 = vadd.f32 0.0, %v140
    %v142 = vpop.f32.mrf.mxu0
    %143 = vdwg.mxu0
    %v144 = vadd.f32 %v49, %v136
    %v145 = vadd.f32 %v50, %v141
    %146 = vst [vmem:[#allocation2] sm:$0xff] %v144
    %147 = vst [vmem:[#allocation2 + $0x8] sm:$0xff] %v145
    // Predicated region
    $region26: #{tpu_custom_call.1} parent=1 // pred_check
      %p148 = pneg %p43
    $region27: #{tpu_custom_call.1} parent=1 // pred_check_branch
      %150 = sbr.rel (%p148) target = $region29
    $region28: #{tpu_custom_call.1} parent=1 // pred_region
      %v151 = vld [vmem:[#allocation2] sm:$0xff]
      %v152 = vld [vmem:[#allocation2 + $0x8] sm:$0xff]
      %v153 = vld [vmem:[%s2] sm:$0x1]
      %v155 = vlaneseq
      %v156 = vshrl.u32 %v155, 7
      %v157 = vsub.s32 0, %v156
      %v158 = vrot.slane %v153, %v157
      %v160 = vadd.f32 %v151, %v158
      %v161 = vadd.f32 %v152, %v158
      %162 = vst [vmem:[#allocation8] sm:$0xff] %v160
      %163 = vst [vmem:[#allocation8 + $0x8] sm:$0xff] %v161
    $region29: #{tpu_custom_call.1} parent=1 // pred_fallthru
      _
    // Predicated region
    $region30: #{tpu_custom_call.1} parent=1 // pred_check
      _
    $region31: #{tpu_custom_call.1} parent=1 // pred_check_branch
      %165 = sbr.rel (0) target = $region33
    $region32: #{tpu_custom_call.1} parent=1 // pred_region
      %s167 = ssub.s32 256, 256
      %168 = vsyncadd [#allocation5], %s167
      %s169 = sshll.u32 [#allocation8], 4
      %s170 = int_to_ptr.vmem [resolvable:$true] %s169
      %175 = dma.vmem_to_hbm [thread:$0]  %s170, 256, %s3, [#allocation5], 128, 128, 8
    $region33: #{tpu_custom_call.1} parent=1 // pred_fallthru
      _
    // Predicated region
    $region34: #{tpu_custom_call.1} parent=1 // pred_check
      _
    $region35: #{tpu_custom_call.1} parent=1 // pred_check_branch
      %177 = sbr.rel (0) target = $region37
    $region36: #{tpu_custom_call.1} parent=1 // pred_region
      %178 = dma.done [#allocation5], 256
    $region37: #{tpu_custom_call.1} parent=1 // pred_fallthru
      _
    %179 = vsyncpa [#allocation4], 1
    %180 = vsyncpa [#allocation7], 1
    %181 = vsyncpa [#allocation5], 1

</llo_original>
